<compile_context>
chip_gen: v5e
topology: v5e:2x2
jax: 0.10.0
libtpu: 0.0.40
codegen_flags: <defaults>
</compile_context>

<pallas_src>
import functools

import jax
import jax.numpy as jnp
from jax import lax
from jax.experimental import pallas as pl
from jax.experimental.pallas import tpu as pltpu


def _round_up(x, m):
    return ((x + m - 1) // m) * m


def _margin_loss_kernel(f1_ref, f2_ref, label_ref, pred_ref, loss_ref, acc_ref,
                        *, d_total, d_tile):
    # f1_ref / f2_ref: (TB, TD) in caller dtype; label_ref: (1, TB) f32 {-1,+1}
    # acc_ref: (8, TB) f32 scratch, persistent across the D grid axis.
    k = pl.program_id(1)
    nk = pl.num_programs(1)

    @pl.when(k == 0)
    def _():
        acc_ref[...] = jnp.zeros_like(acc_ref)

    f1 = f1_ref[...].astype(jnp.float32)
    f2 = f2_ref[...].astype(jnp.float32)
    diff = f1 - f2                                          # (TB, TD) f32

    if d_total % d_tile != 0:
        # Zero the lanes of the last (partial) D-tile that lie past D so the
        # block padding never enters the sum of squares.
        lane = lax.broadcasted_iota(jnp.int32, diff.shape, 1)
        diff = jnp.where(k * d_tile + lane < d_total, diff, 0.0)

    diff2 = diff * diff                                     # (TB, TD) f32

    # Lane-dense per-row reduction: contract a ones LHS against diff2 over the
    # D-tile (both operands contract their last dim, i.e. ones @ diff2^T on
    # the MXU).  Result lands directly in (8, TB) lane layout; rows identical.
    ones_lhs = jnp.ones((8, d_tile), jnp.float32)
    ssq8 = lax.dot_general(
        ones_lhs, diff2,
        dimension_numbers=(((1,), (1,)), ((), ())),
        preferred_element_type=jnp.float32)                 # (8, TB)
    acc_ref[...] += ssq8

    @pl.when(k == nk - 1)
    def _():
        lbl = (label_ref[...] + 1.0) * 0.5                  # (1, TB)
        sq = acc_ref[0:1, :] + 1e-9                         # (1, TB) == distance**2
        dist = jnp.sqrt(sq)                                 # only the hinge needs sqrt
        hinge = jnp.maximum(1.0 - dist, 0.0)
        loss_rows = lbl * sq + (1.0 - lbl) * (hinge * hinge)

        # Lanes past B (last partial batch tile) hold garbage, but Pallas masks
        # the out-of-range lanes of the partial output-block store, so they
        # never reach HBM and never enter the mean computed in the wrapper.
        pred_ref[...] = (sq >= 0.25).astype(jnp.int32)      # distance >= 0.5
        loss_ref[...] = loss_rows


def margin_loss(vector_feature1, vector_feature2, label):
    """Pallas-backed MarginLoss.forward.

    Args:
      vector_feature1: (B, D) float32 or bfloat16
      vector_feature2: (B, D) same dtype as vector_feature1
      label:           (B,)   values in {-1, +1}
    Returns:
      (prediction (B,) int32, loss () float32)
    """
    B, D = vector_feature1.shape
    f1 = vector_feature1                     # no wrapper upcast: keep HBM bytes low
    f2 = vector_feature2
    lbl = label.astype(jnp.float32).reshape(1, B)           # lane-dense label

    itemsize = jnp.dtype(f1.dtype).itemsize

    # --- D tiling: bound the per-step feature slab (and the (8, TD) ones
    # constant); partial last D-tile is masked inside the kernel.
    max_td = 1024
    td = D if D <= max_td else max_td          # == D (full) or multiple of 128

    # --- Batch tiling, sized by bytes.  Count the in-kernel f32 temporaries
    # (f1/f2 upcasts, diff, diff2 ~ 4 * TB*TD*4 B) on top of the 2-input x
    # 2-buffer pipelined tiles so the chosen TB actually fits the VMEM limit.
    per_elem = 4 * itemsize + 4 * 4            # double-buffered inputs + f32 temps
    work_budget = 28 * 1024 * 1024             # headroom under vmem_limit below
    tb = work_budget // max(per_elem * td, 1)
    tb = max(128, min(4096, (tb // 128) * 128))             # multiple of 128
    tb = min(tb, _round_up(B, 128))
    # v7x has 2 TensorCores: make sure the "parallel" batch axis has >= 2 tiles.
    if B > 256 and pl.cdiv(B, tb) == 1:
        tb = max(128, _round_up(pl.cdiv(B, 2), 128))

    grid = (pl.cdiv(B, tb), pl.cdiv(D, td))

    kernel = functools.partial(_margin_loss_kernel, d_total=D, d_tile=td)

    pred2d, loss_rows = pl.pallas_call(
        kernel,
        grid=grid,
        in_specs=[
            pl.BlockSpec((tb, td), lambda i, k: (i, k)),
            pl.BlockSpec((tb, td), lambda i, k: (i, k)),
            pl.BlockSpec((1, tb), lambda i, k: (0, i)),
        ],
        out_specs=(
            pl.BlockSpec((1, tb), lambda i, k: (0, i)),
            pl.BlockSpec((1, tb), lambda i, k: (0, i)),
        ),
        out_shape=(
            jax.ShapeDtypeStruct((1, B), jnp.int32),
            jax.ShapeDtypeStruct((1, B), jnp.float32),
        ),
        scratch_shapes=[pltpu.VMEM((8, tb), jnp.float32)],
        compiler_params=pltpu.CompilerParams(
            dimension_semantics=("parallel", "arbitrary"),
            vmem_limit_bytes=48 * 1024 * 1024),
        cost_estimate=pl.CostEstimate(
            flops=19 * B * D + 10 * B,           # diff/square + 8-row MXU contraction
            transcendentals=B,
            bytes_accessed=2 * B * D * itemsize + 3 * B * 4),
    )(f1, f2, lbl)

    # Tiny final mean outside the kernel (per-tile results are independent,
    # which keeps the batch grid axis "parallel" for v7x megacore).
    loss = (jnp.sum(loss_rows) * (1.0 / B)).astype(jnp.float32)
    return pred2d.reshape(B), loss


def _reference(f1, f2, label):
    f1 = f1.astype(jnp.float32)
    f2 = f2.astype(jnp.float32)
    label = (label.astype(jnp.float32) + 1.0) / 2.0
    distance = jnp.sqrt(jnp.sum((f1 - f2) ** 2, axis=1) + 1e-9)
    loss = jnp.mean(label * distance ** 2
                    + (1.0 - label) * jnp.clip(1.0 - distance, 0.0) ** 2)
    pred = jnp.where(distance >= 0.5, 1, 0).astype(jnp.int32)
    return pred, loss


if __name__ == "__main__":
    B, D = 8, 32
    key = jax.random.PRNGKey(0)
    k1, k2, k3 = jax.random.split(key, 3)
    f1 = jax.random.normal(k1, (B, D), dtype=jnp.float32)
    f2 = jax.random.normal(k2, (B, D), dtype=jnp.float32) * 0.1 + f1 * 0.5
    label = jnp.where(jax.random.bernoulli(k3, 0.5, (B,)), 1.0, -1.0).astype(jnp.float32)

    pred, loss = margin_loss(f1, f2, label)
    jax.block_until_ready((pred, loss))

    pred_ref, loss_ref = _reference(f1, f2, label)
    assert pred.shape == (B,) and pred.dtype == jnp.int32
    assert loss.shape == () and loss.dtype == jnp.float32
    assert bool(jnp.all(pred == pred_ref))
    assert bool(jnp.allclose(loss, loss_ref, rtol=1e-5, atol=1e-5))

    print("KERNEL_OK")
</pallas_src>

<mosaic_0001>
module attributes {stable_mosaic.version = 11 : i64} {
  func.func @_margin_loss_kernel(%arg0: i32, %arg1: i32, %arg2: memref<128x32xf32, #tpu.memory_space<vmem>>, %arg3: memref<128x32xf32, #tpu.memory_space<vmem>>, %arg4: memref<1x128xf32, #tpu.memory_space<vmem>>, %arg5: memref<1x128xi32, #tpu.memory_space<vmem>>, %arg6: memref<1x128xf32, #tpu.memory_space<vmem>>, %arg7: memref<8x128xf32, #tpu.memory_space<vmem>>) attributes {dimension_semantics = [#tpu.dimension_semantics<parallel>, #tpu.dimension_semantics<arbitrary>], iteration_bounds = array<i64: 1, 1>, scalar_prefetch = 0 : i64, scratch_operands = 1 : i64, tpu.core_type = #tpu.core_type<tc>, window_params = [{transform_indices = @transform_0, window_bounds = array<i64: 128, 32>}, {transform_indices = @transform_1, window_bounds = array<i64: 128, 32>}, {transform_indices = @transform_2, window_bounds = array<i64: 1, 128>}, {transform_indices = @transform_3, window_bounds = array<i64: 1, 128>}, {transform_indices = @transform_4, window_bounds = array<i64: 1, 128>}]} {
    %c0_i32 = arith.constant 0 : i32
    %0 = arith.cmpi eq, %arg1, %c0_i32 : i32
    %1 = arith.extui %0 : i1 to i32
    %c0_i32_0 = arith.constant 0 : i32
    %2 = arith.cmpi ne, %1, %c0_i32_0 : i32
    scf.if %2 {
      %cst_11 = arith.constant 0.000000e+00 : f32
      %15 = vector.broadcast %cst_11 : f32 to vector<8x128xf32>
      %c0_12 = arith.constant 0 : index
      %c0_13 = arith.constant 0 : index
      %16 = vector.load %arg7[%c0_12, %c0_13] : memref<8x128xf32, #tpu.memory_space<vmem>>, vector<8x128xf32>
      tpu.vector_store %arg7[%c0_12, %c0_13], %15 {strides = array<i32>} : memref<8x128xf32, #tpu.memory_space<vmem>>, vector<8x128xf32>,
    } else {
    }
    %c0 = arith.constant 0 : index
    %c0_1 = arith.constant 0 : index
    %3 = vector.load %arg2[%c0, %c0_1] : memref<128x32xf32, #tpu.memory_space<vmem>>, vector<128x32xf32>
    %c0_2 = arith.constant 0 : index
    %c0_3 = arith.constant 0 : index
    %4 = vector.load %arg3[%c0_2, %c0_3] : memref<128x32xf32, #tpu.memory_space<vmem>>, vector<128x32xf32>
    %5 = arith.subf %3, %4 : vector<128x32xf32>
    %6 = arith.mulf %5, %5 : vector<128x32xf32>
    %cst = arith.constant 1.000000e+00 : f32
    %7 = vector.broadcast %cst : f32 to vector<8x32xf32>
    %cst_4 = arith.constant dense<0.000000e+00> : vector<8x128xf32>
    %8 = tpu.matmul %7, %6, %cst_4 {dimension_numbers = #tpu.dot_dimension_numbers<[1], [1], [0], [0], [0, 0, 1, 0], [], []>} : vector<8x32xf32>, vector<128x32xf32>, vector<8x128xf32> -> vector<8x128xf32>
    %c0_5 = arith.constant 0 : index
    %c0_6 = arith.constant 0 : index
    %9 = vector.load %arg7[%c0_5, %c0_6] : memref<8x128xf32, #tpu.memory_space<vmem>>, vector<8x128xf32>
    %10 = arith.addf %9, %8 : vector<8x128xf32>
    %c0_7 = arith.constant 0 : index
    %c0_8 = arith.constant 0 : index
    %11 = vector.load %arg7[%c0_7, %c0_8] : memref<8x128xf32, #tpu.memory_space<vmem>>, vector<8x128xf32>
    tpu.vector_store %arg7[%c0_7, %c0_8], %10 {strides = array<i32>} : memref<8x128xf32, #tpu.memory_space<vmem>>, vector<8x128xf32>,
    %c0_i32_9 = arith.constant 0 : i32
    %12 = arith.cmpi eq, %arg1, %c0_i32_9 : i32
    %13 = arith.extui %12 : i1 to i32
    %c0_i32_10 = arith.constant 0 : i32
    %14 = arith.cmpi ne, %13, %c0_i32_10 : i32
    scf.if %14 {
      %c0_11 = arith.constant 0 : index
      %c0_12 = arith.constant 0 : index
      %15 = vector.load %arg4[%c0_11, %c0_12] : memref<1x128xf32, #tpu.memory_space<vmem>>, vector<1x128xf32>
      %cst_13 = arith.constant 1.000000e+00 : f32
      %16 = vector.broadcast %cst_13 : f32 to vector<1x128xf32>
      %17 = arith.addf %15, %16 : vector<1x128xf32>
      %cst_14 = arith.constant 5.000000e-01 : f32
      %18 = vector.broadcast %cst_14 : f32 to vector<1x128xf32>
      %19 = arith.mulf %17, %18 : vector<1x128xf32>
      %c0_15 = arith.constant 0 : index
      %c0_16 = arith.constant 0 : index
      %20 = vector.load %arg7[%c0_15, %c0_16] : memref<8x128xf32, #tpu.memory_space<vmem>>, vector<1x128xf32>
      %cst_17 = arith.constant 9.99999971E-10 : f32
      %21 = vector.broadcast %cst_17 : f32 to vector<1x128xf32>
      %22 = arith.addf %20, %21 : vector<1x128xf32>
      %23 = math.sqrt %22 : vector<1x128xf32>
      %cst_18 = arith.constant 1.000000e+00 : f32
      %24 = vector.broadcast %cst_18 : f32 to vector<1x128xf32>
      %25 = arith.subf %24, %23 : vector<1x128xf32>
      %cst_19 = arith.constant 0.000000e+00 : f32
      %26 = vector.broadcast %cst_19 : f32 to vector<1x128xf32>
      %27 = arith.maximumf %25, %26 : vector<1x128xf32>
      %28 = arith.mulf %19, %22 : vector<1x128xf32>
      %cst_20 = arith.constant 1.000000e+00 : f32
      %29 = vector.broadcast %cst_20 : f32 to vector<1x128xf32>
      %30 = arith.subf %29, %19 : vector<1x128xf32>
      %31 = arith.mulf %27, %27 : vector<1x128xf32>
      %32 = arith.mulf %30, %31 : vector<1x128xf32>
      %33 = arith.addf %28, %32 : vector<1x128xf32>
      %cst_21 = arith.constant 2.500000e-01 : f32
      %34 = vector.broadcast %cst_21 : f32 to vector<1x128xf32>
      %35 = arith.cmpf oge, %22, %34 : vector<1x128xf32>
      %36 = arith.extui %35 : vector<1x128xi1> to vector<1x128xi32>
      %c0_22 = arith.constant 0 : index
      %c0_23 = arith.constant 0 : index
      %37 = vector.load %arg5[%c0_22, %c0_23] : memref<1x128xi32, #tpu.memory_space<vmem>>, vector<1x128xi32>
      tpu.vector_store %arg5[%c0_22, %c0_23], %36 {strides = array<i32>} : memref<1x128xi32, #tpu.memory_space<vmem>>, vector<1x128xi32>,
      %c0_24 = arith.constant 0 : index
      %c0_25 = arith.constant 0 : index
      %38 = vector.load %arg6[%c0_24, %c0_25] : memref<1x128xf32, #tpu.memory_space<vmem>>, vector<1x128xf32>
      tpu.vector_store %arg6[%c0_24, %c0_25], %33 {strides = array<i32>} : memref<1x128xf32, #tpu.memory_space<vmem>>, vector<1x128xf32>,
    } else {
    }
    return
  }
  func.func @transform_0(%arg0: i32, %arg1: i32) -> (i32, i32) {
    %c0_i32 = arith.constant 0 : i32
    return %arg0, %arg1 : i32, i32
  }
  func.func @transform_1(%arg0: i32, %arg1: i32) -> (i32, i32) {
    %c0_i32 = arith.constant 0 : i32
    return %arg0, %arg1 : i32, i32
  }
  func.func @transform_2(%arg0: i32, %arg1: i32) -> (i32, i32) {
    %c0_i32 = arith.constant 0 : i32
    %c0_i32_0 = arith.constant 0 : i32
    return %c0_i32, %arg0 : i32, i32
  }
  func.func @transform_3(%arg0: i32, %arg1: i32) -> (i32, i32) {
    %c0_i32 = arith.constant 0 : i32
    %c0_i32_0 = arith.constant 0 : i32
    return %c0_i32, %arg0 : i32, i32
  }
  func.func @transform_4(%arg0: i32, %arg1: i32) -> (i32, i32) {
    %c0_i32 = arith.constant 0 : i32
    %c0_i32_0 = arith.constant 0 : i32
    return %c0_i32, %arg0 : i32, i32
  }
}

</mosaic_0001>

<llo_original>
// kernel: tpu_custom_call.1
$region0: #{tpu_custom_call.1}
  #allocation0 [shape = 'u32[]', space=smem, size = 0x4, offset = 0x4, fixed_abs, tag = 'smem constant byte address 0x4 - core index']
  #allocation1 [shape = 'u32[72,128]{1,0:T(1,128)}', space=vmem, size = 0x9000, scoped, tag = 'internal scratch']
  #allocation2 [shape = 'f32[8,128]{1,0:T(8,128)}', space=vmem, size = 0x1000, scoped, tag = 'scratch operand']
  %s0 = inlined_call_operand.hbm [shape: f32[8,32], index: 0, kind: input, shape index: {}]
  %s1 = inlined_call_operand.hbm [shape: f32[8,32], index: 1, kind: input, shape index: {}]
  %s2 = inlined_call_operand.vmem [shape: f32[1,8], index: 2, kind: input, shape index: {}]
  %s3 = inlined_call_operand.hbm [shape: s32[1,8], index: 3, kind: output, shape index: {0}]
  %s4 = inlined_call_operand.hbm [shape: f32[1,8], index: 4, kind: output, shape index: {1}]
  %5 = xla_tuple %s3, %s4
  %s6 = sld [smem:[#allocation0]]
  $region46: #{tpu_custom_call.1} parent=0
    _
  %s8 = ssub.s32 1, %s6
  %s9 = scalar_select 0, %s8, %s6
  $region1: #{tpu_custom_call.1} parent=0
    #allocation3 [shape = 'u8[65536]{0}', space=vmem, size = 0x10000, scoped, tag = 'input window, operand 0, single buffered']
    #allocation4 [shape = 's32[1]{0}', space=sflag, size = 0x4, scoped, tag = 'scoped memory for tpu_custom_call.1']
    #allocation5 [shape = 's32[1]{0}', space=sflag, size = 0x4, scoped, tag = 'scoped memory for tpu_custom_call.1']
    #allocation6 [shape = 'u8[65536]{0}', space=vmem, size = 0x10000, scoped, tag = 'input window, operand 1, single buffered']
    #allocation7 [shape = 's32[1]{0}', space=sflag, size = 0x4, scoped, tag = 'scoped memory for tpu_custom_call.1']
    #allocation8 [shape = 'u8[512]{0}', space=vmem, size = 0x400, scoped, tag = 'output window, operand 0, single buffered']
    #allocation9 [shape = 'u8[512]{0}', space=vmem, size = 0x400, scoped, tag = 'output window, operand 1, single buffered']
    #allocation10 [shape = 's32[1]{0}', space=sflag, size = 0x4, scoped, tag = 'scoped memory for tpu_custom_call.1']
    %10 = vsyncpa [#allocation4], 0
    %11 = vsyncpa [#allocation7], 0
    %12 = vsyncpa [#allocation5], 0
    %13 = vsyncpa [#allocation10], 0
    // Predicated region
    $region2: #{tpu_custom_call.1} parent=1 // pred_check
      _
    $region3: #{tpu_custom_call.1} parent=1 // pred_check_branch
      %15 = sbr.rel (0) target = $region5
    $region4: #{tpu_custom_call.1} parent=1 // pred_region
      %17 = vsyncadd [#allocation4], 1920
      %s18 = sshll.u32 %s0, 4
      %s19 = int_to_ptr.hbm [resolvable:$true] %s18
      %s20 = sshll.u32 [#allocation3], 4
      %s21 = int_to_ptr.vmem [resolvable:$true] %s20
      %26 = dma.hbm_to_vmem [thread:$0]  %s19, 128, %s21, [#allocation4], 128, 128, 8
    $region5: #{tpu_custom_call.1} parent=1 // pred_fallthru
      _
    // Predicated region
    $region6: #{tpu_custom_call.1} parent=1 // pred_check
      _
    $region7: #{tpu_custom_call.1} parent=1 // pred_check_branch
      %28 = sbr.rel (0) target = $region9
    $region8: #{tpu_custom_call.1} parent=1 // pred_region
      %30 = vsyncadd [#allocation7], 1920
      %s31 = sshll.u32 %s1, 4
      %s32 = int_to_ptr.hbm [resolvable:$true] %s31
      %s33 = sshll.u32 [#allocation6], 4
      %s34 = int_to_ptr.vmem [resolvable:$true] %s33
      %39 = dma.hbm_to_vmem [thread:$0]  %s32, 128, %s34, [#allocation7], 128, 128, 8
    $region9: #{tpu_custom_call.1} parent=1 // pred_fallthru
      _
    // Predicated region
    $region10: #{tpu_custom_call.1} parent=1 // pred_check
      _
    $region11: #{tpu_custom_call.1} parent=1 // pred_check_branch
      %41 = sbr.rel (0) target = $region13
    $region12: #{tpu_custom_call.1} parent=1 // pred_region
      _
    $region13: #{tpu_custom_call.1} parent=1 // pred_fallthru
      _
    // Predicated region
    $region14: #{tpu_custom_call.1} parent=1 // pred_check
      _
    $region15: #{tpu_custom_call.1} parent=1 // pred_check_branch
      %43 = sbr.rel (0) target = $region17
    $region16: #{tpu_custom_call.1} parent=1 // pred_region
      %45 = dma.done [#allocation4], 2048
    $region17: #{tpu_custom_call.1} parent=1 // pred_fallthru
      _
    // Predicated region
    $region18: #{tpu_custom_call.1} parent=1 // pred_check
      _
    $region19: #{tpu_custom_call.1} parent=1 // pred_check_branch
      %47 = sbr.rel (0) target = $region21
    $region20: #{tpu_custom_call.1} parent=1 // pred_region
      %49 = dma.done [#allocation7], 2048
    $region21: #{tpu_custom_call.1} parent=1 // pred_fallthru
      _
    %p50 = scmp.eq.s32.totalorder 0, 0
    // Predicated region
    $region22: #{tpu_custom_call.1} parent=1 // pred_check
      %p51 = pneg %p50
    $region23: #{tpu_custom_call.1} parent=1 // pred_check_branch
      %53 = sbr.rel (%p51) target = $region25
    $region24: #{tpu_custom_call.1} parent=1 // pred_region
      %54 = vst [vmem:[#allocation2] sm:$0xff] 0.0
    $region25: #{tpu_custom_call.1} parent=1 // pred_fallthru
      _
    %v55 = vld [vmem:[#allocation3] sm:$0xff]
    %v56 = vld [vmem:[#allocation3 + $0x8] sm:$0xff]
    %v57 = vld [vmem:[#allocation3 + $0x10] sm:$0xff]
    %v58 = vld [vmem:[#allocation3 + $0x18] sm:$0xff]
    %v59 = vld [vmem:[#allocation3 + $0x20] sm:$0xff]
    %v60 = vld [vmem:[#allocation3 + $0x28] sm:$0xff]
    %v61 = vld [vmem:[#allocation3 + $0x30] sm:$0xff]
    %v62 = vld [vmem:[#allocation3 + $0x38] sm:$0xff]
    %v63 = vld [vmem:[#allocation3 + $0x40] sm:$0xff]
    %v64 = vld [vmem:[#allocation3 + $0x48] sm:$0xff]
    %v65 = vld [vmem:[#allocation3 + $0x50] sm:$0xff]
    %v66 = vld [vmem:[#allocation3 + $0x58] sm:$0xff]
    %v67 = vld [vmem:[#allocation3 + $0x60] sm:$0xff]
    %v68 = vld [vmem:[#allocation3 + $0x68] sm:$0xff]
    %v69 = vld [vmem:[#allocation3 + $0x70] sm:$0xff]
    %v70 = vld [vmem:[#allocation3 + $0x78] sm:$0xff]
    %v71 = vld [vmem:[#allocation6] sm:$0xff]
    %v72 = vld [vmem:[#allocation6 + $0x8] sm:$0xff]
    %v73 = vld [vmem:[#allocation6 + $0x10] sm:$0xff]
    %v74 = vld [vmem:[#allocation6 + $0x18] sm:$0xff]
    %v75 = vld [vmem:[#allocation6 + $0x20] sm:$0xff]
    %v76 = vld [vmem:[#allocation6 + $0x28] sm:$0xff]
    %v77 = vld [vmem:[#allocation6 + $0x30] sm:$0xff]
    %v78 = vld [vmem:[#allocation6 + $0x38] sm:$0xff]
    %v79 = vld [vmem:[#allocation6 + $0x40] sm:$0xff]
    %v80 = vld [vmem:[#allocation6 + $0x48] sm:$0xff]
    %v81 = vld [vmem:[#allocation6 + $0x50] sm:$0xff]
    %v82 = vld [vmem:[#allocation6 + $0x58] sm:$0xff]
    %v83 = vld [vmem:[#allocation6 + $0x60] sm:$0xff]
    %v84 = vld [vmem:[#allocation6 + $0x68] sm:$0xff]
    %v85 = vld [vmem:[#allocation6 + $0x70] sm:$0xff]
    %v86 = vld [vmem:[#allocation6 + $0x78] sm:$0xff]
    %v87 = vsub.f32 %v55, %v71
    %v88 = vsub.f32 %v56, %v72
    %v89 = vsub.f32 %v57, %v73
    %v90 = vsub.f32 %v58, %v74
    %v91 = vsub.f32 %v59, %v75
    %v92 = vsub.f32 %v60, %v76
    %v93 = vsub.f32 %v61, %v77
    %v94 = vsub.f32 %v62, %v78
    %v95 = vsub.f32 %v63, %v79
    %v96 = vsub.f32 %v64, %v80
    %v97 = vsub.f32 %v65, %v81
    %v98 = vsub.f32 %v66, %v82
    %v99 = vsub.f32 %v67, %v83
    %v100 = vsub.f32 %v68, %v84
    %v101 = vsub.f32 %v69, %v85
    %v102 = vsub.f32 %v70, %v86
    %v103 = vmul.f32 %v87, %v87
    %v104 = vmul.f32 %v88, %v88
    %v105 = vmul.f32 %v89, %v89
    %v106 = vmul.f32 %v90, %v90
    %v107 = vmul.f32 %v91, %v91
    %v108 = vmul.f32 %v92, %v92
    %v109 = vmul.f32 %v93, %v93
    %v110 = vmul.f32 %v94, %v94
    %v111 = vmul.f32 %v95, %v95
    %v112 = vmul.f32 %v96, %v96
    %v113 = vmul.f32 %v97, %v97
    %v114 = vmul.f32 %v98, %v98
    %v115 = vmul.f32 %v99, %v99
    %v116 = vmul.f32 %v100, %v100
    %v117 = vmul.f32 %v101, %v101
    %v118 = vmul.f32 %v102, %v102
    %vm119 = vcmask 261120
    %v121 = vsel %vm119, 1.0, 0
    %v124 = vsel %vm119, %v103, 0
    %v127 = vsel %vm119, %v104, 0
    %v130 = vsel %vm119, %v105, 0
    %v133 = vsel %vm119, %v106, 0
    %v136 = vsel %vm119, %v107, 0
    %v139 = vsel %vm119, %v108, 0
    %v142 = vsel %vm119, %v109, 0
    %v145 = vsel %vm119, %v110, 0
    %v148 = vsel %vm119, %v111, 0
    %v151 = vsel %vm119, %v112, 0
    %v154 = vsel %vm119, %v113, 0
    %v157 = vsel %vm119, %v114, 0
    %v160 = vsel %vm119, %v115, 0
    %v163 = vsel %vm119, %v116, 0
    %v166 = vsel %vm119, %v117, 0
    %v169 = vsel %vm119, %v118, 0
    %171 = vmatpush.xpose.msra.mxu0 %v169
    %172 = vmatpush.xpose.msra.mxu0 %v166
    %173 = vmatpush.xpose.msra.mxu0 %v163
    %174 = vmatpush.xpose.msra.mxu0 %v160
    %175 = vmatpush.xpose.msra.mxu0 %v157
    %176 = vmatpush.xpose.msra.mxu0 %v154
    %177 = vmatpush.xpose.msra.mxu0 %v151
    %178 = vmatpush.xpose.msra.mxu0 %v148
    %179 = vmatpush.xpose.msra.mxu0 %v145
    %180 = vmatpush.xpose.msra.mxu0 %v142
    %181 = vmatpush.xpose.msra.mxu0 %v139
    %182 = vmatpush.xpose.msra.mxu0 %v136
    %183 = vmatpush.xpose.msra.mxu0 %v133
    %184 = vmatpush.xpose.msra.mxu0 %v130
    %185 = vmatpush.xpose.msra.mxu0 %v127
    %186 = vmatpush.xpose.msra.mxu0 %v124
    %187 = vmatmul.f32.gmra.mxu0 %v121
    %v188 = vpop.f32.mrf.mxu0
    %v189 = vadd.f32 0.0, %v188
    %190 = vdwg.mxu0
    %v191 = vld [vmem:[#allocation2] sm:$0xff]
    %v192 = vadd.f32 %v191, %v189
    %193 = vst [vmem:[#allocation2] sm:$0xff] %v192
    // Predicated region
    $region26: #{tpu_custom_call.1} parent=1 // pred_check
      %p194 = pneg %p50
    $region27: #{tpu_custom_call.1} parent=1 // pred_check_branch
      %196 = sbr.rel (%p194) target = $region29
    $region28: #{tpu_custom_call.1} parent=1 // pred_region
      %v197 = vld [vmem:[%s2] sm:$0x1]
      %v198 = vadd.f32 %v197, 1.0
      %v199 = vmul.f32 %v198, 0.5
      %v200 = vld [vmem:[#allocation2] sm:$0x1]
      %v201 = vadd.f32 %v200, 1e-09
      %v202 = vrsqrt.pop %v201
      %v203 = vmul.f32 %v202, %v201
      %v204 = vmul.f32 %v203, %v202
      %v205 = vmul.f32 0.5, %v204
      %v206 = vsub.f32 1.5, %v205
      %v207 = vmul.f32 %v202, %v206
      %v208 = vmul.f32 %v201, %v207
      %vm209 = vcmp.eq.f32.partialorder %v201, inf
      %v210 = vsel %vm209, %v201, %v208
      %vm211 = vcmp.eq.f32.partialorder %v201, 0.0
      %v212 = vand.u32 %v201, 2147483648
      %v213 = vsel %vm211, %v212, %v210
      %v214 = vsub.f32 1.0, %v213
      %v215 = vmax.f32 %v214, 0.0
      %v216 = vmul.f32 %v199, %v201
      %v217 = vsub.f32 1.0, %v199
      %v218 = vmul.f32 %v215, %v215
      %v219 = vmul.f32 %v217, %v218
      %v220 = vadd.f32 %v216, %v219
      %vm221 = vcmp.ge.f32.partialorder %v201, 0.25
      %v222 = vsel %vm221, 1, 0
      %223 = vst [vmem:[#allocation8] sm:$0x1] %v222
      %224 = vst [vmem:[#allocation9] sm:$0x1] %v220
    $region29: #{tpu_custom_call.1} parent=1 // pred_fallthru
      _
    // Predicated region
    $region30: #{tpu_custom_call.1} parent=1 // pred_check
      _
    $region31: #{tpu_custom_call.1} parent=1 // pred_check_branch
      %226 = sbr.rel (0) target = $region33
    $region32: #{tpu_custom_call.1} parent=1 // pred_region
      %228 = vsyncadd [#allocation5], 0
      %s230 = sshll.u32 [#allocation8], 4
      %s231 = int_to_ptr.vmem [resolvable:$true] %s230
      %s232 = sshll.u32 %s3, 4
      %s233 = int_to_ptr.hbm [resolvable:$true] %s232
      %235 = dma.vmem_to_hbm [thread:$0]  %s231, 16, %s233, [#allocation5]
    $region33: #{tpu_custom_call.1} parent=1 // pred_fallthru
      _
    // Predicated region
    $region34: #{tpu_custom_call.1} parent=1 // pred_check
      _
    $region35: #{tpu_custom_call.1} parent=1 // pred_check_branch
      %237 = sbr.rel (0) target = $region37
    $region36: #{tpu_custom_call.1} parent=1 // pred_region
      %239 = vsyncadd [#allocation10], 0
      %s241 = sshll.u32 [#allocation9], 4
      %s242 = int_to_ptr.vmem [resolvable:$true] %s241
      %s243 = sshll.u32 %s4, 4
      %s244 = int_to_ptr.hbm [resolvable:$true] %s243
      %246 = dma.vmem_to_hbm [thread:$0]  %s242, 16, %s244, [#allocation10]
    $region37: #{tpu_custom_call.1} parent=1 // pred_fallthru
      _
    // Predicated region
    $region38: #{tpu_custom_call.1} parent=1 // pred_check
      _
    $region39: #{tpu_custom_call.1} parent=1 // pred_check_branch
      %248 = sbr.rel (0) target = $region41
    $region40: #{tpu_custom_call.1} parent=1 // pred_region
      %250 = dma.done [#allocation5], 16
    $region41: #{tpu_custom_call.1} parent=1 // pred_fallthru
      _
    // Predicated region
    $region42: #{tpu_custom_call.1} parent=1 // pred_check
      _
    $region43: #{tpu_custom_call.1} parent=1 // pred_check_branch
      %252 = sbr.rel (0) target = $region45
    $region44: #{tpu_custom_call.1} parent=1 // pred_region
      %254 = dma.done [#allocation10], 16
    $region45: #{tpu_custom_call.1} parent=1 // pred_fallthru
      _
    %255 = vsyncpa [#allocation4], 1
    %256 = vsyncpa [#allocation7], 1
    %257 = vsyncpa [#allocation5], 1
    %258 = vsyncpa [#allocation10], 1

</llo_original>
